<compile_context>
chip_gen: v6e
topology: v6e:2x2x1
jax: 0.10.0
libtpu: 0.0.40
codegen_flags: <defaults>
</compile_context>

<pallas_src>
import functools

import jax
import jax.numpy as jnp
from jax import lax
from jax.experimental import pallas as pl
from jax.experimental.pallas import tpu as pltpu


def _ipow(base, exponent: int):
    """base ** exponent for a static non-negative integer exponent (VPU-only)."""
    e = int(exponent)
    if e == 0:
        return jnp.ones_like(base)
    result = None
    acc = base
    while e > 0:
        if e & 1:
            result = acc if result is None else result * acc
        e >>= 1
        if e:
            acc = acc * acc
    return result


def _asl_kernel(x_ref, y_ref, out_ref, *, gamma_neg, gamma_pos, clip, eps,
                n_valid, block_rows, apply_row_mask, fast_binary_path):
    x = x_ref[...].astype(jnp.float32)
    y = y_ref[...].astype(jnp.float32)

    # sigmoid probabilities (EUP)
    xs_pos = jax.nn.sigmoid(x)
    xs_neg = 1.0 - xs_pos

    # asymmetric clipping (probability shifting) on the negative branch
    if clip is not None and clip > 0:
        xs_neg = jnp.minimum(xs_neg + clip, 1.0)

    has_focal = (gamma_neg > 0) or (gamma_pos > 0)

    if fast_binary_path:
        # y is {0, 1}: the BCE blend and pt collapse to a single select, and
        # the focal exponent is one of two static integers.
        pos = y > 0.5
        p_sel = jnp.where(pos, xs_pos, xs_neg)          # == pt for binary y
        loss = jnp.log(jnp.maximum(p_sel, eps))         # single EUP log
        if has_focal:
            base = 1.0 - p_sel
            w = jnp.where(pos,
                          _ipow(base, int(gamma_pos)),
                          _ipow(base, int(gamma_neg)))
            loss = loss * w
    else:
        # Exact reference formulation (valid for soft targets too).
        los_pos = y * jnp.log(jnp.maximum(xs_pos, eps))
        los_neg = (1.0 - y) * jnp.log(jnp.maximum(xs_neg, eps))
        loss = los_pos + los_neg
        if has_focal:
            pt = xs_pos * y + xs_neg * (1.0 - y)
            one_sided_gamma = gamma_pos * y + gamma_neg * (1.0 - y)
            loss = loss * jnp.power(1.0 - pt, one_sided_gamma)
    # TODO(synk): disable_torch_grad_focal_loss (stop-gradient on the focal
    # weight) only affects the backward pass; forward semantics are identical.

    if apply_row_mask:
        row0 = pl.program_id(0) * block_rows
        ridx = row0 + lax.broadcasted_iota(jnp.int32, (block_rows, 1), 0)
        loss = jnp.where(ridx < n_valid, loss, 0.0)

    # Per-tile partial sum over rows only (mostly VPU vreg adds); the final
    # cross-lane reduce and negation happen once, outside the kernel.
    out_ref[...] = jnp.sum(loss, axis=0, keepdims=True)


def _choose_block_rows(n, c, target_bytes=2 * 1024 * 1024):
    """Largest row tile (multiple of 8) targeting ~2 MiB per f32 input block.

    2 inputs x 2 pipeline buffers x 2 MiB = 8 MiB of VMEM — comfortably inside
    the scoped-VMEM defaults of v5e/v6e (128 MiB) and v7x (64 MiB).
    """
    rows = max(8, (target_bytes // (4 * c)) // 8 * 8)
    n_pad8 = ((n + 7) // 8) * 8
    return int(min(rows, n_pad8))


def asymmetric_loss(x, y, *, gamma_neg=4, gamma_pos=1, clip=0.05, eps=1e-8,
                    block_rows=None, binary_targets=True):
    """Pallas implementation of AsymmetricLoss.forward.  Returns a scalar.

    `binary_targets=True` (the documented usage: y is a binarized multi-label
    vector) enables the select/integer-power fast path; set it to False for
    soft targets to get the exact reference formulation.
    """
    assert x.shape == y.shape and x.ndim == 2
    n, c = x.shape
    itemsize_in = x.dtype.itemsize + y.dtype.itemsize

    if block_rows is None:
        block_rows = _choose_block_rows(n, c)
    block_rows = max(8, (int(block_rows) // 8) * 8)

    # Pad the batch to a multiple of block_rows; padded rows are masked inside
    # the kernel so they contribute exactly zero.
    num_tiles = pl.cdiv(n, block_rows)
    n_padded = num_tiles * block_rows
    if n_padded != n:
        pad = n_padded - n
        x = jnp.pad(x, ((0, pad), (0, 0)))
        y = jnp.pad(y, ((0, pad), (0, 0)))

    fast_binary_path = (
        binary_targets
        and float(gamma_pos).is_integer()
        and float(gamma_neg).is_integer()
        and gamma_pos >= 0
        and gamma_neg >= 0
    )

    kernel = functools.partial(
        _asl_kernel,
        gamma_neg=float(gamma_neg),
        gamma_pos=float(gamma_pos),
        clip=clip,
        eps=float(eps),
        n_valid=n,
        block_rows=block_rows,
        apply_row_mask=(n_padded != n),
        fast_binary_path=fast_binary_path,
    )

    # Advisory cost hint: ~3 transcendentals/elem (sigmoid + log) on the fast
    # path; memory-bound at 2 f32 inputs per element.
    cost = pl.CostEstimate(
        flops=24 * n_padded * c,
        transcendentals=3 * n_padded * c,
        bytes_accessed=n_padded * c * itemsize_in + num_tiles * c * 4,
    )

    partials = pl.pallas_call(
        kernel,
        out_shape=jax.ShapeDtypeStruct((num_tiles, c), jnp.float32),
        grid_spec=pltpu.PrefetchScalarGridSpec(
            num_scalar_prefetch=0,
            grid=(num_tiles,),
            in_specs=[
                pl.BlockSpec((block_rows, c), lambda i: (i, 0)),
                pl.BlockSpec((block_rows, c), lambda i: (i, 0)),
            ],
            out_specs=pl.BlockSpec((1, c), lambda i: (i, 0)),
        ),
        compiler_params=pltpu.CompilerParams(
            # Per-tile independent outputs -> grid axis is truly parallel
            # (lets Mosaic shard the loop across v7x's two TensorCores).
            dimension_semantics=("parallel",),
            vmem_limit_bytes=32 * 1024 * 1024,
        ),
        cost_estimate=cost,
    )(x, y)

    # Final tiny reduction + negation outside the kernel (f32 accumulation).
    return -jnp.sum(partials)


def _reference(x, y, gamma_neg=4, gamma_pos=1, clip=0.05, eps=1e-8):
    x = x.astype(jnp.float32)
    y = y.astype(jnp.float32)
    xs_pos = jax.nn.sigmoid(x)
    xs_neg = 1.0 - xs_pos
    xs_neg = jnp.minimum(xs_neg + clip, 1.0)
    los_pos = y * jnp.log(jnp.maximum(xs_pos, eps))
    los_neg = (1.0 - y) * jnp.log(jnp.maximum(xs_neg, eps))
    loss = los_pos + los_neg
    pt = xs_pos * y + xs_neg * (1.0 - y)
    gamma = gamma_pos * y + gamma_neg * (1.0 - y)
    loss = loss * jnp.power(1.0 - pt, gamma)
    return -jnp.sum(loss)


if __name__ == "__main__":
    key = jax.random.PRNGKey(0)
    kx, ky = jax.random.split(key)

    # Multi-label head: batch x num_classes.
    N, C = 16, 128
    x = jax.random.normal(kx, (N, C), dtype=jnp.float32)
    y = (jax.random.uniform(ky, (N, C)) > 0.7).astype(jnp.float32)

    out = jax.block_until_ready(asymmetric_loss(x, y))
    ref = jax.block_until_ready(_reference(x, y))
    assert jnp.allclose(out, ref, rtol=1e-5, atol=1e-4), (out, ref)

    # Uneven batch exercises the zero-pad + in-kernel row mask.
    N2 = 13
    x2 = jax.random.normal(ky, (N2, C), dtype=jnp.float32)
    y2 = (jax.random.uniform(kx, (N2, C)) > 0.6).astype(jnp.float32)
    out2 = jax.block_until_ready(asymmetric_loss(x2, y2))
    ref2 = jax.block_until_ready(_reference(x2, y2))
    assert jnp.allclose(out2, ref2, rtol=1e-5, atol=1e-4), (out2, ref2)

    # General (soft-target-safe) path sanity check on the same data.
    out3 = jax.block_until_ready(asymmetric_loss(x2, y2, binary_targets=False))
    assert jnp.allclose(out3, ref2, rtol=1e-5, atol=1e-4), (out3, ref2)

    print("KERNEL_OK")
</pallas_src>

<mosaic_0001>
module attributes {stable_mosaic.version = 11 : i64} {
  func.func @_asl_kernel(%arg0: i32, %arg1: memref<16x128xf32, #tpu.memory_space<vmem>>, %arg2: memref<16x128xf32, #tpu.memory_space<vmem>>, %arg3: memref<1x128xf32, #tpu.memory_space<vmem>>) attributes {dimension_semantics = [#tpu.dimension_semantics<parallel>], iteration_bounds = array<i64: 1>, scalar_prefetch = 0 : i64, scratch_operands = 0 : i64, tpu.core_type = #tpu.core_type<tc>, window_params = [{transform_indices = @transform_0, window_bounds = array<i64: 16, 128>}, {transform_indices = @transform_1, window_bounds = array<i64: 16, 128>}, {transform_indices = @transform_2, window_bounds = array<i64: 1, 128>}]} {
    %c0 = arith.constant 0 : index
    %c0_0 = arith.constant 0 : index
    %0 = vector.load %arg1[%c0, %c0_0] : memref<16x128xf32, #tpu.memory_space<vmem>>, vector<16x128xf32>
    %c0_1 = arith.constant 0 : index
    %c0_2 = arith.constant 0 : index
    %1 = vector.load %arg2[%c0_1, %c0_2] : memref<16x128xf32, #tpu.memory_space<vmem>>, vector<16x128xf32>
    %2 = arith.negf %0 : vector<16x128xf32>
    %3 = math.exp %2 : vector<16x128xf32>
    %cst = arith.constant 1.000000e+00 : f32
    %4 = vector.broadcast %cst : f32 to vector<16x128xf32>
    %5 = arith.addf %4, %3 : vector<16x128xf32>
    %6 = arith.divf %4, %5 : vector<16x128xf32>
    %cst_3 = arith.constant 1.000000e+00 : f32
    %7 = vector.broadcast %cst_3 : f32 to vector<16x128xf32>
    %8 = arith.subf %7, %6 : vector<16x128xf32>
    %cst_4 = arith.constant 5.000000e-02 : f32
    %9 = vector.broadcast %cst_4 : f32 to vector<16x128xf32>
    %10 = arith.addf %8, %9 : vector<16x128xf32>
    %cst_5 = arith.constant 1.000000e+00 : f32
    %11 = vector.broadcast %cst_5 : f32 to vector<16x128xf32>
    %12 = arith.minimumf %10, %11 : vector<16x128xf32>
    %cst_6 = arith.constant 5.000000e-01 : f32
    %13 = vector.broadcast %cst_6 : f32 to vector<16x128xf32>
    %14 = arith.cmpf ogt, %1, %13 : vector<16x128xf32>
    %15 = arith.select %14, %6, %12 : vector<16x128xi1>, vector<16x128xf32>
    %cst_7 = arith.constant 9.99999993E-9 : f32
    %16 = vector.broadcast %cst_7 : f32 to vector<16x128xf32>
    %17 = arith.maximumf %15, %16 : vector<16x128xf32>
    %18 = math.log %17 : vector<16x128xf32>
    %cst_8 = arith.constant 1.000000e+00 : f32
    %19 = vector.broadcast %cst_8 : f32 to vector<16x128xf32>
    %20 = arith.subf %19, %15 : vector<16x128xf32>
    %21 = arith.mulf %20, %20 : vector<16x128xf32>
    %22 = arith.mulf %21, %21 : vector<16x128xf32>
    %23 = arith.select %14, %20, %22 : vector<16x128xi1>, vector<16x128xf32>
    %24 = arith.mulf %18, %23 : vector<16x128xf32>
    %cst_9 = arith.constant dense<0.000000e+00> : vector<128xf32>
    %25 = vector.multi_reduction <add>, %24, %cst_9 [0] : vector<16x128xf32> to vector<128xf32>
    %26 = vector.shape_cast %25 : vector<128xf32> to vector<1x128xf32>
    %c0_10 = arith.constant 0 : index
    %c0_11 = arith.constant 0 : index
    %27 = vector.load %arg3[%c0_10, %c0_11] : memref<1x128xf32, #tpu.memory_space<vmem>>, vector<1x128xf32>
    tpu.vector_store %arg3[%c0_10, %c0_11], %26 {strides = array<i32>} : memref<1x128xf32, #tpu.memory_space<vmem>>, vector<1x128xf32>,
    return
  }
  func.func @transform_0(%arg0: i32) -> (i32, i32) {
    %c0_i32 = arith.constant 0 : i32
    %c0_i32_0 = arith.constant 0 : i32
    return %arg0, %c0_i32 : i32, i32
  }
  func.func @transform_1(%arg0: i32) -> (i32, i32) {
    %c0_i32 = arith.constant 0 : i32
    %c0_i32_0 = arith.constant 0 : i32
    return %arg0, %c0_i32 : i32, i32
  }
  func.func @transform_2(%arg0: i32) -> (i32, i32) {
    %c0_i32 = arith.constant 0 : i32
    %c0_i32_0 = arith.constant 0 : i32
    return %arg0, %c0_i32 : i32, i32
  }
}

</mosaic_0001>

<llo_original>
// kernel: tpu_custom_call.1
$region0: #{tpu_custom_call.1}
  #allocation0 [shape = 'u32[]', space=smem, size = 0x4, offset = 0x4, fixed_abs, tag = 'smem constant byte address 0x4 - core index']
  #allocation1 [shape = 'u32[144,128]{1,0:T(1,128)}', space=vmem, size = 0x12000, scoped, tag = 'internal scratch']
  %s0 = inlined_call_operand.hbm [shape: f32[16,128], index: 0, kind: input, shape index: {}]
  %s1 = inlined_call_operand.hbm [shape: f32[16,128], index: 1, kind: input, shape index: {}]
  %s2 = inlined_call_operand.hbm [shape: f32[1,128], index: 2, kind: output, shape index: {}]
  %s3 = sld [smem:[#allocation0]]
  $region26: #{tpu_custom_call.1} parent=0
    _
  %s5 = ssub.s32 1, %s3
  %s6 = scalar_select 0, %s5, %s3
  $region1: #{tpu_custom_call.1} parent=0
    #allocation2 [shape = 'u8[8192]{0}', space=vmem, size = 0x2000, scoped, tag = 'input window, operand 0, single buffered']
    #allocation3 [shape = 's32[1]{0}', space=sflag, size = 0x4, scoped, tag = 'scoped memory for tpu_custom_call.1']
    #allocation4 [shape = 's32[1]{0}', space=sflag, size = 0x4, scoped, tag = 'scoped memory for tpu_custom_call.1']
    #allocation5 [shape = 'u8[8192]{0}', space=vmem, size = 0x2000, scoped, tag = 'input window, operand 1, single buffered']
    #allocation6 [shape = 's32[1]{0}', space=sflag, size = 0x4, scoped, tag = 'scoped memory for tpu_custom_call.1']
    #allocation7 [shape = 'u8[512]{0}', space=vmem, size = 0x400, scoped, tag = 'output window, operand 0, single buffered']
    %7 = vsyncpa [#allocation3], 0
    %8 = vsyncpa [#allocation6], 0
    %9 = vsyncpa [#allocation4], 0
    // Predicated region
    $region2: #{tpu_custom_call.1} parent=1 // pred_check
      _
    $region3: #{tpu_custom_call.1} parent=1 // pred_check_branch
      %11 = sbr.rel (0) target = $region5
    $region4: #{tpu_custom_call.1} parent=1 // pred_region
      %s13 = ssub.s32 256, 256
      %14 = vsyncadd [#allocation3], %s13
      %s15 = sshll.u32 [#allocation2], 4
      %s16 = int_to_ptr.vmem [resolvable:$true] %s15
      %21 = dma.hbm_to_vmem [thread:$0]  %s0, 256, %s16, [#allocation3], 128, 128, 8
    $region5: #{tpu_custom_call.1} parent=1 // pred_fallthru
      _
    // Predicated region
    $region6: #{tpu_custom_call.1} parent=1 // pred_check
      _
    $region7: #{tpu_custom_call.1} parent=1 // pred_check_branch
      %23 = sbr.rel (0) target = $region9
    $region8: #{tpu_custom_call.1} parent=1 // pred_region
      %s25 = ssub.s32 256, 256
      %26 = vsyncadd [#allocation6], %s25
      %s27 = sshll.u32 [#allocation5], 4
      %s28 = int_to_ptr.vmem [resolvable:$true] %s27
      %33 = dma.hbm_to_vmem [thread:$0]  %s1, 256, %s28, [#allocation6], 128, 128, 8
    $region9: #{tpu_custom_call.1} parent=1 // pred_fallthru
      _
    // Predicated region
    $region10: #{tpu_custom_call.1} parent=1 // pred_check
      _
    $region11: #{tpu_custom_call.1} parent=1 // pred_check_branch
      %35 = sbr.rel (0) target = $region13
    $region12: #{tpu_custom_call.1} parent=1 // pred_region
      %36 = dma.done [#allocation3], 256
    $region13: #{tpu_custom_call.1} parent=1 // pred_fallthru
      _
    // Predicated region
    $region14: #{tpu_custom_call.1} parent=1 // pred_check
      _
    $region15: #{tpu_custom_call.1} parent=1 // pred_check_branch
      %38 = sbr.rel (0) target = $region17
    $region16: #{tpu_custom_call.1} parent=1 // pred_region
      %39 = dma.done [#allocation6], 256
    $region17: #{tpu_custom_call.1} parent=1 // pred_fallthru
      _
    %v40 = vld [vmem:[#allocation2] sm:$0xff]
    %v41 = vld [vmem:[#allocation2 + $0x8] sm:$0xff]
    %v42 = vld [vmem:[#allocation5] sm:$0xff]
    %v43 = vld [vmem:[#allocation5 + $0x8] sm:$0xff]
    %v44 = vxor.u32 %v40, 2147483648
    %v45 = vxor.u32 %v41, 2147483648
    %v46 = vmul.f32 %v44, 1.442695
    %v47 = vpow.pop %v46
    %v48 = vmul.f32 %v45, 1.442695
    %v49 = vpow.pop %v48
    %v50 = vadd.f32 %v47, 1.0
    %v51 = vadd.f32 %v49, 1.0
    %v52 = vrcp.pop %v50
    %v53 = vmul.f32 1.0, %v52
    %v54 = vrcp.pop %v51
    %v55 = vmul.f32 1.0, %v54
    %v56 = vsub.f32 1.0, %v53
    %v57 = vsub.f32 1.0, %v55
    %v58 = vadd.f32 %v56, 0.05
    %v59 = vadd.f32 %v57, 0.05
    %v60 = vmin.f32 %v58, 1.0
    %v61 = vmin.f32 %v59, 1.0
    %vm62 = vcmp.gt.f32.partialorder %v42, 0.5
    %vm63 = vcmp.gt.f32.partialorder %v43, 0.5
    %v64 = vsel %vm62, %v53, %v60
    %v65 = vsel %vm63, %v55, %v61
    %v66 = vmax.f32 %v64, 1e-08
    %v67 = vmax.f32 %v65, 1e-08
    %v68 = vlog2.pop %v66
    %v69 = vmul.f32 %v68, 0.6931472
    %v70 = vlog2.pop %v67
    %v71 = vmul.f32 %v70, 0.6931472
    %v72 = vsub.f32 1.0, %v64
    %v73 = vsub.f32 1.0, %v65
    %v74 = vmul.f32 %v72, %v72
    %v75 = vmul.f32 %v73, %v73
    %v76 = vmul.f32 %v74, %v74
    %v77 = vmul.f32 %v75, %v75
    %v78 = vsel %vm62, %v72, %v76
    %v79 = vsel %vm63, %v73, %v77
    %v80 = vmul.f32 %v69, %v78
    %v81 = vmul.f32 %v71, %v79
    %v82 = vadd.f32 %v80, %v81
    %v83 = vrot.slane %v82, 4
    %v84 = vadd.f32 %v82, %v83
    %v85 = vrot.slane %v84, 2
    %v86 = vadd.f32 %v84, %v85
    %v87 = vrot.slane %v86, 1
    %v88 = vadd.f32 %v86, %v87
    %89 = vst [vmem:[#allocation7] sm:$0x1] %v88
    // Predicated region
    $region18: #{tpu_custom_call.1} parent=1 // pred_check
      _
    $region19: #{tpu_custom_call.1} parent=1 // pred_check_branch
      %91 = sbr.rel (0) target = $region21
    $region20: #{tpu_custom_call.1} parent=1 // pred_region
      %s93 = ssub.s32 16, 16
      %94 = vsyncadd [#allocation4], %s93
      %s96 = sshll.u32 [#allocation7], 4
      %s97 = int_to_ptr.vmem [resolvable:$true] %s96
      %99 = dma.vmem_to_hbm [thread:$0]  %s97, 16, %s2, [#allocation4]
    $region21: #{tpu_custom_call.1} parent=1 // pred_fallthru
      _
    // Predicated region
    $region22: #{tpu_custom_call.1} parent=1 // pred_check
      _
    $region23: #{tpu_custom_call.1} parent=1 // pred_check_branch
      %101 = sbr.rel (0) target = $region25
    $region24: #{tpu_custom_call.1} parent=1 // pred_region
      %102 = dma.done [#allocation4], 16
    $region25: #{tpu_custom_call.1} parent=1 // pred_fallthru
      _
    %103 = vsyncpa [#allocation3], 1
    %104 = vsyncpa [#allocation6], 1
    %105 = vsyncpa [#allocation4], 1

</llo_original>
